<compile_context>
chip_gen: v6e
topology: v6e:2x2x1
jax: 0.10.0
libtpu: 0.0.40
codegen_flags: <defaults>
</compile_context>

<pallas_src>
import functools
import math

import jax
import jax.numpy as jnp
from jax import lax
from jax.experimental import pallas as pl
from jax.experimental.pallas import tpu as pltpu

_SQRT2 = math.sqrt(2.0)
_TILE_BYTES = 4 << 20       # ~4 MiB image tile per grid step
_VMEM_LIMIT = 48 * 1024 * 1024


# ----------------------------- Pallas kernel ------------------------------- #

def _apply_activation(x, activation):
    if activation == "sin":
        return jnp.sin(x)
    # Default: FusedLeakyReLU (bias already added): leaky_relu(x, 0.2) * sqrt(2)
    return jnp.where(x >= 0.0, x, 0.2 * x) * _SQRT2


def _tail_kernel(w_ref, img_ref, noise_ref, mult_ref, bias_ref, out_ref, *,
                 activation):
    """out = act(mult * img + w * noise + bias) on one (1, C_blk, ...) tile.

    img  : (1, c_blk, S_tile)  or (1, c_blk, h_blk, W)
    noise: (1, 1,     S_tile)  or (1, 1,     h_blk, W)   (bcast over channels)
    mult : (1, c_blk, 1)       or (1, c_blk, 1, 1)        (per-(b,cout) demod*scale)
    bias : (1, c_blk, 1)       or (1, c_blk, 1, 1)        (per channel)
    """
    w = w_ref[0]                                            # f32 scalar (SMEM)
    x = img_ref[...].astype(jnp.float32)
    x = x * mult_ref[...].astype(jnp.float32)
    x = x + w * noise_ref[...].astype(jnp.float32)
    x = x + bias_ref[...].astype(jnp.float32)
    out_ref[...] = _apply_activation(x, activation).astype(out_ref.dtype)


# ------------------------------ Tiling helper ------------------------------ #

def _sublane_mult(itemsize):
    if itemsize >= 4:
        return 8
    return 32 // itemsize          # 16 for bf16, 32 for int8/fp8


def _plan_tail_blocks(B, C, H, W, itemsize, tile_bytes=_TILE_BYTES):
    """Pick the tail layout and block sizes.

    Returns ("flat", c_blk, s_tile) for the lane-dense (B, C, H*W) layout, or
    ("rows", c_blk, h_blk) for the (B, C, H, W) fallback (W full-extent).
    """
    S = H * W
    sub = _sublane_mult(itemsize)

    if S % 128 == 0 or sub * S * itemsize <= tile_bytes:
        # Lane-dense flattened spatial layout.
        c_blk, s_tile = C, S
        while c_blk * s_tile * itemsize > tile_bytes:
            if s_tile % 256 == 0:                    # stays a multiple of 128
                s_tile //= 2
            elif c_blk % (2 * sub) == 0:             # stays sublane-aligned
                c_blk //= 2
            else:
                break
        # v7x: make sure both TensorCores get at least one parallel step.
        if B * (S // s_tile) < 2 and s_tile % 256 == 0:
            s_tile //= 2
        return "flat", c_blk, s_tile

    # Large, non-128-multiple spatial extent: tile along H, keep W full-extent
    # (a block dim equal to the full array dim is always layout-legal).
    c_blk, h_blk = C, H
    while c_blk * h_blk * W * itemsize > tile_bytes:
        if h_blk % (2 * sub) == 0:
            h_blk //= 2
        elif c_blk % 2 == 0:
            c_blk //= 2
        else:
            break
    if B * (H // h_blk) < 2 and h_blk % (2 * sub) == 0:
        h_blk //= 2
    return "rows", c_blk, h_blk


# ----------------------- Fused demod/noise/bias/act tail ------------------- #

def styled_tail(image, noise_weight, bias, noise=None, *, mult=None,
                activation=None, noise_seed=0, out_dtype=None, in_place=False):
    """Fused (per-(b,c) multiplier) + NoiseInjection + bias + activation.

    image: (B, C, H, W). noise_weight: scalar/(1,). bias: (C,).
    noise: (B, 1, H, W) or None (generated with jax.random, PyTorch semantics).
    mult : (B, C) multiplier folded into the tail (demod*scale), or None (=1).
    """
    if activation == "sinrelu":
        # TODO(synk): ScaledLeakyReLUSin reorders channels; not supported here.
        raise NotImplementedError("sinrelu is not supported by the fused tail")

    B, C, H, W = image.shape
    S = H * W
    out_dtype = image.dtype if out_dtype is None else out_dtype
    itemsize = jnp.dtype(image.dtype).itemsize

    if noise is None:
        noise = jax.random.normal(jax.random.PRNGKey(noise_seed),
                                  (B, 1, H, W), jnp.float32)
    if mult is None:
        mult = jnp.ones((B, C), jnp.float32)

    w = jnp.asarray(noise_weight, jnp.float32).reshape(1)     # f32 scalar in SMEM

    layout, c_blk, sp = _plan_tail_blocks(B, C, H, W, itemsize)

    if layout == "flat":
        img = image.reshape(B, C, S)
        noise_r = noise.reshape(B, 1, S).astype(image.dtype)
        mult_r = mult.reshape(B, C, 1).astype(jnp.float32)
        bias_r = jnp.asarray(bias, jnp.float32).reshape(1, C, 1)
        n_sp, n_c = S // sp, C // c_blk
        grid = (B, n_sp, n_c)
        img_spec = pl.BlockSpec((1, c_blk, sp), lambda b, s, c: (b, c, s))
        noise_spec = pl.BlockSpec((1, 1, sp), lambda b, s, c: (b, 0, s))
        mult_spec = pl.BlockSpec((1, c_blk, 1), lambda b, s, c: (b, c, 0))
        bias_spec = pl.BlockSpec((1, c_blk, 1), lambda b, s, c: (0, c, 0))
        out_shape = jax.ShapeDtypeStruct((B, C, S), out_dtype)
    else:
        img = image
        noise_r = noise.astype(image.dtype)
        mult_r = mult.reshape(B, C, 1, 1).astype(jnp.float32)
        bias_r = jnp.asarray(bias, jnp.float32).reshape(1, C, 1, 1)
        n_sp, n_c = H // sp, C // c_blk
        grid = (B, n_sp, n_c)
        img_spec = pl.BlockSpec((1, c_blk, sp, W), lambda b, h, c: (b, c, h, 0))
        noise_spec = pl.BlockSpec((1, 1, sp, W), lambda b, h, c: (b, 0, h, 0))
        mult_spec = pl.BlockSpec((1, c_blk, 1, 1), lambda b, h, c: (b, c, 0, 0))
        bias_spec = pl.BlockSpec((1, c_blk, 1, 1), lambda b, h, c: (0, c, 0, 0))
        out_shape = jax.ShapeDtypeStruct((B, C, H, W), out_dtype)

    # Channel axis innermost + 'arbitrary' -> the unchanged noise block is not
    # re-DMA'd across channel blocks. If batch/spatial give no parallelism at
    # all, let the channel axis carry the megacore split instead.
    channel_sem = "parallel" if (B * n_sp == 1 and n_c > 1) else "arbitrary"
    compiler_params = pltpu.CompilerParams(
        dimension_semantics=("parallel", "parallel", channel_sem),
        vmem_limit_bytes=_VMEM_LIMIT,
    )

    can_alias = bool(in_place) and image.dtype == out_dtype
    out = pl.pallas_call(
        functools.partial(_tail_kernel, activation=activation),
        out_shape=out_shape,
        grid=grid,
        in_specs=[
            pl.BlockSpec(memory_space=pltpu.SMEM),   # noise weight (f32 scalar)
            img_spec,
            noise_spec,
            mult_spec,
            bias_spec,
        ],
        out_specs=img_spec,
        input_output_aliases={1: 0} if can_alias else {},
        compiler_params=compiler_params,
    )(w, img, noise_r, mult_r, bias_r)

    return out.reshape(B, C, H, W)


# --------------------------- ModulatedConv2d (XLA) ------------------------- #

def modulated_conv2d(x, style, conv_weight, mod_weight, mod_bias, *,
                     demodulate=True, eps=1e-8, conv_dtype=None):
    """Dense-conv reformulation of ModulatedConv2d (no up/downsample).

    Returns (conv_raw, mult) with
        ModulatedConv2d(x, style) == mult[:, :, None, None] * conv_raw
    where conv_raw = conv2d(x * s_per_input_channel, shared_weight) runs as ONE
    dense conv over the whole batch (MXU-friendly) and mult = scale * demod
    (or scale) is folded into the fused Pallas tail.
    """
    B, Cin, H, W = x.shape
    Cout = conv_weight.shape[1]
    k = conv_weight.shape[3]
    style_dim = mod_weight.shape[1]

    # EqualLinear modulation (lr_mul=1, bias_init=1, no activation).
    s = style @ (mod_weight * (1.0 / math.sqrt(style_dim))).T + mod_bias   # (B,Cin)

    scale = 1.0 / math.sqrt(Cin * k * k)
    if demodulate:
        # sum_{cin,kh,kw} (scale*W*s)^2 == scale^2 * (s^2 @ sum_kk W^2)
        wsq = jnp.sum(jnp.square(conv_weight[0].astype(jnp.float32)),
                      axis=(2, 3))                                          # (Cout,Cin)
        sumsq = (scale * scale) * (jnp.square(s) @ wsq.T)                   # (B,Cout)
        mult = scale * lax.rsqrt(sumsq + eps)
    else:
        mult = jnp.full((B, Cout), scale, jnp.float32)

    cdtype = x.dtype if conv_dtype is None else conv_dtype
    x_mod = (x.astype(jnp.float32) * s[:, :, None, None]).astype(cdtype)
    w = conv_weight[0].astype(cdtype)

    pad = k // 2
    conv_raw = lax.conv_general_dilated(
        x_mod, w, window_strides=(1, 1), padding=[(pad, pad), (pad, pad)],
        dimension_numbers=("NCHW", "OIHW", "NCHW"),
        preferred_element_type=jnp.float32)
    return conv_raw, mult


# ------------------------------- StyledConv -------------------------------- #

def styled_conv_forward(x, style, params, noise=None, *, activation=None,
                        noise_seed=0, demodulate=True, conv_dtype=None):
    """Full StyledConv forward: dense modulated conv (XLA) + fused Pallas tail."""
    conv_raw, mult = modulated_conv2d(
        x, style, params["conv_weight"], params["mod_weight"],
        params["mod_bias"], demodulate=demodulate, conv_dtype=conv_dtype)
    # conv_raw is an internal intermediate -> safe to alias in place.
    return styled_tail(conv_raw, params["noise_weight"], params["act_bias"],
                       noise=noise, mult=mult, activation=activation,
                       noise_seed=noise_seed, out_dtype=x.dtype, in_place=True)


# ------------------- PyTorch-faithful reference (test only) ---------------- #

def _modulated_conv2d_reference(x, style, conv_weight, mod_weight, mod_bias, *,
                                demodulate=True, eps=1e-8):
    """Grouped-conv formulation exactly as in the PyTorch module (test only)."""
    B, Cin, H, W = x.shape
    Cout, k = conv_weight.shape[1], conv_weight.shape[3]
    style_dim = mod_weight.shape[1]
    s = style @ (mod_weight * (1.0 / math.sqrt(style_dim))).T + mod_bias
    scale = 1.0 / math.sqrt(Cin * k * k)
    w = scale * conv_weight * s.reshape(B, 1, Cin, 1, 1)
    if demodulate:
        demod = lax.rsqrt(jnp.sum(w * w, axis=(2, 3, 4)) + eps)
        w = w * demod.reshape(B, Cout, 1, 1, 1)
    pad = k // 2
    out = lax.conv_general_dilated(
        x.reshape(1, B * Cin, H, W), w.reshape(B * Cout, Cin, k, k),
        window_strides=(1, 1), padding=[(pad, pad), (pad, pad)],
        dimension_numbers=("NCHW", "OIHW", "NCHW"), feature_group_count=B)
    return out.reshape(B, Cout, H, W)


def _tail_reference(conv, noise, noise_w, bias, activation):
    t = conv
    if noise is not None:
        t = t + noise_w * noise
    t = t + bias.reshape(1, -1, 1, 1)
    if activation == "sin":
        return jnp.sin(t)
    return jnp.where(t >= 0.0, t, 0.2 * t) * _SQRT2


# ---------------------------------- Test ----------------------------------- #

if __name__ == "__main__":
    # Test-only: make the dense-conv reformulation bit-comparable to the
    # grouped-conv reference on TPU (avoids default bf16 matmul rounding).
    jax.config.update("jax_default_matmul_precision", "highest")

    key = jax.random.PRNGKey(0)
    k_x, k_style, k_cw, k_mw, k_b, k_noise, k_x2, k_n2 = jax.random.split(key, 8)

    B, Cin, Cout, K, style_dim, H, W = 2, 4, 8, 3, 32, 16, 16

    x = jax.random.normal(k_x, (B, Cin, H, W), dtype=jnp.float32)
    style = jax.random.normal(k_style, (B, style_dim), dtype=jnp.float32)
    noise = jax.random.normal(k_noise, (B, 1, H, W), dtype=jnp.float32)

    params = {
        "conv_weight": jax.random.normal(k_cw, (1, Cout, Cin, K, K), jnp.float32),
        "mod_weight": jax.random.normal(k_mw, (Cin, style_dim), jnp.float32),
        "mod_bias": jnp.ones((Cin,), jnp.float32),             # bias_init=1
        # Module init is zeros(1); use a nonzero value to exercise the path.
        "noise_weight": jnp.array([0.37], jnp.float32),
        "act_bias": 0.1 * jax.random.normal(k_b, (Cout,), jnp.float32),
    }

    fwd = jax.jit(styled_conv_forward, static_argnames=("activation", "demodulate"))

    conv_ref = _modulated_conv2d_reference(
        x, style, params["conv_weight"], params["mod_weight"], params["mod_bias"])

    # --- provided-noise path, default FusedLeakyReLU activation -------------
    out = jax.block_until_ready(fwd(x, style, params, noise, activation=None))
    assert out.shape == (B, Cout, H, W)
    ref = _tail_reference(conv_ref, noise, params["noise_weight"][0],
                          params["act_bias"], None)
    assert jnp.allclose(out, ref, atol=1e-3, rtol=1e-3), "mismatch (lrelu path)"

    # --- 'sin' activation ----------------------------------------------------
    out_sin = jax.block_until_ready(fwd(x, style, params, noise, activation="sin"))
    ref_sin = _tail_reference(conv_ref, noise, params["noise_weight"][0],
                              params["act_bias"], "sin")
    assert jnp.allclose(out_sin, ref_sin, atol=1e-3, rtol=1e-3), "mismatch (sin path)"

    # --- noise=None path (generated via jax.random, PyTorch semantics) ------
    # With the module's zero-init noise weight the result must match the
    # no-noise reference exactly (validates everything except the noise values).
    params_w0 = dict(params, noise_weight=jnp.zeros((1,), jnp.float32))
    out_gen0 = jax.block_until_ready(fwd(x, style, params_w0, None, activation=None))
    ref0 = _tail_reference(conv_ref, None, 0.0, params["act_bias"], None)
    assert jnp.allclose(out_gen0, ref0, atol=1e-3, rtol=1e-3), \
        "mismatch on generated-noise path with zero noise weight"

    # Nonzero weight + generated noise: shape / finiteness sanity check.
    out_gen = jax.block_until_ready(
        fwd(x, style, params, None, activation=None, noise_seed=123))
    assert out_gen.shape == (B, Cout, H, W)
    assert bool(jnp.all(jnp.isfinite(out_gen)))

    # --- non-128-multiple spatial extent exercises the fallback tiling ------
    H2 = W2 = 12
    x2 = jax.random.normal(k_x2, (B, Cin, H2, W2), dtype=jnp.float32)
    noise2 = jax.random.normal(k_n2, (B, 1, H2, W2), dtype=jnp.float32)
    out2 = jax.block_until_ready(fwd(x2, style, params, noise2, activation=None))
    conv_ref2 = _modulated_conv2d_reference(
        x2, style, params["conv_weight"], params["mod_weight"], params["mod_bias"])
    ref2 = _tail_reference(conv_ref2, noise2, params["noise_weight"][0],
                           params["act_bias"], None)
    assert out2.shape == (B, Cout, H2, W2)
    assert jnp.allclose(out2, ref2, atol=1e-3, rtol=1e-3), "mismatch (12x12 path)"

    print("KERNEL_OK")
</pallas_src>

<mosaic_0001>
module attributes {stable_mosaic.version = 11 : i64} {
  func.func @_tail_kernel(%arg0: i32, %arg1: i32, %arg2: i32, %arg3: memref<1xf32, #tpu.memory_space<smem>>, %arg4: memref<1x8x256xf32, #tpu.memory_space<vmem>>, %arg5: memref<1x1x256xf32, #tpu.memory_space<vmem>>, %arg6: memref<1x8x1xf32, #tpu.memory_space<vmem>>, %arg7: memref<1x8x1xf32, #tpu.memory_space<vmem>>, %arg8: memref<1x8x256xf32, #tpu.memory_space<vmem>>) attributes {dimension_semantics = [#tpu.dimension_semantics<parallel>, #tpu.dimension_semantics<parallel>, #tpu.dimension_semantics<arbitrary>], iteration_bounds = array<i64: 2, 1, 1>, scalar_prefetch = 0 : i64, scratch_operands = 0 : i64, tpu.core_type = #tpu.core_type<tc>, window_params = [{transform_indices = @transform_0, window_bounds = array<i64: 1>}, {transform_indices = @transform_1, window_bounds = array<i64: 1, 8, 256>}, {transform_indices = @transform_2, window_bounds = array<i64: 1, 1, 256>}, {transform_indices = @transform_3, window_bounds = array<i64: 1, 8, 1>}, {transform_indices = @transform_4, window_bounds = array<i64: 1, 8, 1>}, {transform_indices = @transform_5, window_bounds = array<i64: 1, 8, 256>}]} {
    %c0 = arith.constant 0 : index
    %0 = memref.load %arg3[%c0] : memref<1xf32, #tpu.memory_space<smem>>
    %c0_0 = arith.constant 0 : index
    %c0_1 = arith.constant 0 : index
    %c0_2 = arith.constant 0 : index
    %1 = vector.load %arg4[%c0_0, %c0_1, %c0_2] : memref<1x8x256xf32, #tpu.memory_space<vmem>>, vector<1x8x256xf32>
    %c0_3 = arith.constant 0 : index
    %c0_4 = arith.constant 0 : index
    %c0_5 = arith.constant 0 : index
    %2 = vector.load %arg6[%c0_3, %c0_4, %c0_5] : memref<1x8x1xf32, #tpu.memory_space<vmem>>, vector<1x8x1xf32>
    %3 = vector.broadcast %2 : vector<1x8x1xf32> to vector<1x8x256xf32>
    %4 = arith.mulf %1, %3 : vector<1x8x256xf32>
    %c0_6 = arith.constant 0 : index
    %c0_7 = arith.constant 0 : index
    %c0_8 = arith.constant 0 : index
    %5 = vector.load %arg5[%c0_6, %c0_7, %c0_8] : memref<1x1x256xf32, #tpu.memory_space<vmem>>, vector<1x1x256xf32>
    %6 = vector.broadcast %0 : f32 to vector<1x1x256xf32>
    %7 = arith.mulf %6, %5 : vector<1x1x256xf32>
    %8 = vector.broadcast %7 : vector<1x1x256xf32> to vector<1x8x256xf32>
    %9 = arith.addf %4, %8 : vector<1x8x256xf32>
    %c0_9 = arith.constant 0 : index
    %c0_10 = arith.constant 0 : index
    %c0_11 = arith.constant 0 : index
    %10 = vector.load %arg7[%c0_9, %c0_10, %c0_11] : memref<1x8x1xf32, #tpu.memory_space<vmem>>, vector<1x8x1xf32>
    %11 = vector.broadcast %10 : vector<1x8x1xf32> to vector<1x8x256xf32>
    %12 = arith.addf %9, %11 : vector<1x8x256xf32>
    %cst = arith.constant 0.000000e+00 : f32
    %13 = vector.broadcast %cst : f32 to vector<1x8x256xf32>
    %14 = arith.cmpf oge, %12, %13 : vector<1x8x256xf32>
    %cst_12 = arith.constant 2.000000e-01 : f32
    %15 = vector.broadcast %cst_12 : f32 to vector<1x8x256xf32>
    %16 = arith.mulf %15, %12 : vector<1x8x256xf32>
    %17 = arith.select %14, %12, %16 : vector<1x8x256xi1>, vector<1x8x256xf32>
    %cst_13 = arith.constant 1.41421354 : f32
    %18 = vector.broadcast %cst_13 : f32 to vector<1x8x256xf32>
    %19 = arith.mulf %17, %18 : vector<1x8x256xf32>
    %c0_14 = arith.constant 0 : index
    %c0_15 = arith.constant 0 : index
    %c0_16 = arith.constant 0 : index
    %20 = vector.load %arg8[%c0_14, %c0_15, %c0_16] : memref<1x8x256xf32, #tpu.memory_space<vmem>>, vector<1x8x256xf32>
    tpu.vector_store %arg8[%c0_14, %c0_15, %c0_16], %19 {strides = array<i32>} : memref<1x8x256xf32, #tpu.memory_space<vmem>>, vector<1x8x256xf32>,
    return
  }
  func.func @transform_0(%arg0: i32, %arg1: i32, %arg2: i32) -> i32 {
    %c0_i32 = arith.constant 0 : i32
    %c0_i32_0 = arith.constant 0 : i32
    return %c0_i32 : i32
  }
  func.func @transform_1(%arg0: i32, %arg1: i32, %arg2: i32) -> (i32, i32, i32) {
    %c0_i32 = arith.constant 0 : i32
    return %arg0, %arg2, %arg1 : i32, i32, i32
  }
  func.func @transform_2(%arg0: i32, %arg1: i32, %arg2: i32) -> (i32, i32, i32) {
    %c0_i32 = arith.constant 0 : i32
    %c0_i32_0 = arith.constant 0 : i32
    return %arg0, %c0_i32, %arg1 : i32, i32, i32
  }
  func.func @transform_3(%arg0: i32, %arg1: i32, %arg2: i32) -> (i32, i32, i32) {
    %c0_i32 = arith.constant 0 : i32
    %c0_i32_0 = arith.constant 0 : i32
    return %arg0, %arg2, %c0_i32 : i32, i32, i32
  }
  func.func @transform_4(%arg0: i32, %arg1: i32, %arg2: i32) -> (i32, i32, i32) {
    %c0_i32 = arith.constant 0 : i32
    %c0_i32_0 = arith.constant 0 : i32
    %c0_i32_1 = arith.constant 0 : i32
    return %c0_i32, %arg2, %c0_i32_0 : i32, i32, i32
  }
  func.func @transform_5(%arg0: i32, %arg1: i32, %arg2: i32) -> (i32, i32, i32) {
    %c0_i32 = arith.constant 0 : i32
    return %arg0, %arg2, %arg1 : i32, i32, i32
  }
}

</mosaic_0001>

<llo_original>
// kernel: styled_conv_forward.1
$region0: #{styled_conv_forward.1}
  #allocation0 [shape = 'u32[]', space=smem, size = 0x4, offset = 0x4, fixed_abs, tag = 'smem constant byte address 0x4 - core index']
  #allocation1 [shape = 'u32[144,128]{1,0:T(1,128)}', space=vmem, size = 0x12000, scoped, tag = 'internal scratch']
  #allocation2 [shape = 'f32[1]{0:T(128)S(6)}', space=smem, size = 0x200, scoped, tag = 'scoped memory for styled_conv_forward.1']
  %s0 = inlined_call_operand.<no memory space> [shape: f32[1], index: 0, kind: input, shape index: {}]
  %s1 = inlined_call_operand.vmem [shape: f32[2,8,256], index: 1, kind: input, shape index: {}, may-alias: {1,5}]
  %s2 = inlined_call_operand.vmem [shape: f32[2,1,256], index: 2, kind: input, shape index: {}]
  %s3 = inlined_call_operand.vmem [shape: f32[2,8,1], index: 3, kind: input, shape index: {}]
  %s4 = inlined_call_operand.vmem [shape: f32[1,8,1], index: 4, kind: input, shape index: {}]
  %s5 = inlined_call_operand.vmem [shape: f32[2,8,256], index: 5, kind: output, shape index: {}, may-alias: {1,5}]
  %s6 = sld [smem:[#allocation0]]
  $region53: #{styled_conv_forward.1} parent=0
    _
  %s8 = ssub.s32 1, %s6
  %s9 = scalar_select 0, %s8, %s6
  %10 = sst [smem:[#allocation2]] %s0
  loop: start=0, step=1, limit=4
  $region2: #{styled_conv_forward.1} parent=0 // loop_pre_header
    _
  $region3: #{styled_conv_forward.1} parent=0 // loop_header
    %s12 = sphi 0, %s16
    %p13 = scmp.ge.s32.totalorder %s12, 4
    %s19 = sphi 0, %s38
    %s20 = sphi 0, %s34
    %s21 = sphi 0, %s30
    %s22 = sphi 0, %s19
    %s23 = sphi 0, %s20
    %s24 = sphi 0, %s21
    %s25 = sphi 0, %s22
    %s26 = sphi 0, %s23
    %s27 = sphi 0, %s24
    %s39 = sphi 0, %s39
    %s41 = sphi 0, %s39
    %s42 = sphi 0, %s41
    %s56 = sphi 0, %s42
    %s66 = sphi 0, %s68
    %s69 = sphi 0, %s66
    %s70 = sphi 0, %s69
    %s86 = sphi 0, %s70
    %s94 = sphi 0, %s96
    %s97 = sphi 0, %s94
    %s98 = sphi 0, %s97
    %s114 = sphi 0, %s98
    %s122 = sphi 0, %s124
    %s125 = sphi 0, %s122
    %s126 = sphi 0, %s125
    %s142 = sphi 0, %s126
    %s148 = sphi 0, %s150
    %s151 = sphi 0, %s148
    %s152 = sphi 0, %s151
    %s168 = sphi 0, %s152
    %s178 = sphi 0, %s180
    %s181 = sphi 0, %s178
    %s182 = sphi 0, %s181
    %s198 = sphi 0, %s182
  $region4: #{styled_conv_forward.1} parent=0 // loop_header_branch
    %15 = sbr.rel (%p13) target = $region8
  $region5: #{styled_conv_forward.1} parent=0 // loop_body
    %s17 = ssub.s32 %s12, 1
    %s18 = ssub.s32 %s12, 2
    %s28 = sadd.s32 1, %s21
    %p29 = scmp.ge.s32.totalorder %s28, 1
    %s30 = scalar_select %p29, 0, %s28
    %s31 = sadd.s32 1, %s20
    %s32 = scalar_select %p29, %s31, %s20
    %p33 = scmp.ge.s32.totalorder %s32, 1
    %s34 = scalar_select %p33, 0, %s32
    %s35 = sadd.s32 1, %s19
    %s36 = scalar_select %p33, %s35, %s19
    %p37 = scmp.ge.s32.totalorder %s36, 2
    %s38 = scalar_select %p37, 0, %s36
    %s40 = sadd.s32 %s39, 1
    %p43 = scmp.eq.s32.totalorder %s12, 1
    %p44 = scmp.ne.s32.totalorder %s39, %s41
    %p45 = scmp.eq.s32.totalorder %s12, 0
    %p46 = por %p44, %p45
    %p47 = scmp.ne.s32.totalorder %s39, %s41
    %p48 = scmp.eq.s32.totalorder %s17, 1
    %p49 = por %p47, %p48
    %p50 = scmp.ne.s32.totalorder %s41, %s42
    %p51 = scmp.eq.s32.totalorder %s17, 0
    %p52 = por %p50, %p51
    %p53 = scmp.ne.s32.totalorder %s41, %s42
    %p54 = scmp.eq.s32.totalorder %s18, 1
    %p55 = por %p53, %p54
    %p57 = scmp.ne.s32.totalorder %s42, %s56
    %p58 = scmp.eq.s32.totalorder %s18, 0
    %p59 = por %p57, %p58
    %s60 = ssub.s32 %s19, %s38
    %s61 = ssub.s32 %s21, %s30
    %s62 = sor.u32 %s60, %s61
    %s63 = ssub.s32 %s20, %s34
    %s64 = sor.u32 %s62, %s63
    %p65 = scmp.eq.s32.totalorder %s64, 0
    %s67 = sadd.s32 %s66, 1
    %s68 = scalar_select %p65, %s66, %s67
    %p71 = pneg %p65
    %p72 = scmp.eq.s32.totalorder %s12, 1
    %p73 = por %p71, %p72
    %p74 = scmp.ne.s32.totalorder %s66, %s69
    %p75 = scmp.eq.s32.totalorder %s12, 0
    %p76 = por %p74, %p75
    %p77 = scmp.ne.s32.totalorder %s66, %s69
    %p78 = scmp.eq.s32.totalorder %s17, 1
    %p79 = por %p77, %p78
    %p80 = scmp.ne.s32.totalorder %s69, %s70
    %p81 = scmp.eq.s32.totalorder %s17, 0
    %p82 = por %p80, %p81
    %p83 = scmp.ne.s32.totalorder %s69, %s70
    %p84 = scmp.eq.s32.totalorder %s18, 1
    %p85 = por %p83, %p84
    %p87 = scmp.ne.s32.totalorder %s70, %s86
    %p88 = scmp.eq.s32.totalorder %s18, 0
    %p89 = por %p87, %p88
    %s90 = ssub.s32 %s19, %s38
    %s91 = ssub.s32 %s20, %s34
    %s92 = sor.u32 %s90, %s91
    %p93 = scmp.eq.s32.totalorder %s92, 0
    %s95 = sadd.s32 %s94, 1
    %s96 = scalar_select %p93, %s94, %s95
    %p99 = pneg %p93
    %p100 = scmp.eq.s32.totalorder %s12, 1
    %p101 = por %p99, %p100
    %p102 = scmp.ne.s32.totalorder %s94, %s97
    %p103 = scmp.eq.s32.totalorder %s12, 0
    %p104 = por %p102, %p103
    %p105 = scmp.ne.s32.totalorder %s94, %s97
    %p106 = scmp.eq.s32.totalorder %s17, 1
    %p107 = por %p105, %p106
    %p108 = scmp.ne.s32.totalorder %s97, %s98
    %p109 = scmp.eq.s32.totalorder %s17, 0
    %p110 = por %p108, %p109
    %p111 = scmp.ne.s32.totalorder %s97, %s98
    %p112 = scmp.eq.s32.totalorder %s18, 1
    %p113 = por %p111, %p112
    %p115 = scmp.ne.s32.totalorder %s98, %s114
    %p116 = scmp.eq.s32.totalorder %s18, 0
    %p117 = por %p115, %p116
    %s118 = ssub.s32 %s19, %s38
    %s119 = ssub.s32 %s21, %s30
    %s120 = sor.u32 %s118, %s119
    %p121 = scmp.eq.s32.totalorder %s120, 0
    %s123 = sadd.s32 %s122, 1
    %s124 = scalar_select %p121, %s122, %s123
    %p127 = pneg %p121
    %p128 = scmp.eq.s32.totalorder %s12, 1
    %p129 = por %p127, %p128
    %p130 = scmp.ne.s32.totalorder %s122, %s125
    %p131 = scmp.eq.s32.totalorder %s12, 0
    %p132 = por %p130, %p131
    %p133 = scmp.ne.s32.totalorder %s122, %s125
    %p134 = scmp.eq.s32.totalorder %s17, 1
    %p135 = por %p133, %p134
    %p136 = scmp.ne.s32.totalorder %s125, %s126
    %p137 = scmp.eq.s32.totalorder %s17, 0
    %p138 = por %p136, %p137
    %p139 = scmp.ne.s32.totalorder %s125, %s126
    %p140 = scmp.eq.s32.totalorder %s18, 1
    %p141 = por %p139, %p140
    %p143 = scmp.ne.s32.totalorder %s126, %s142
    %p144 = scmp.eq.s32.totalorder %s18, 0
    %p145 = por %p143, %p144
    %s146 = ssub.s32 %s21, %s30
    %p147 = scmp.eq.s32.totalorder %s146, 0
    %s149 = sadd.s32 %s148, 1
    %s150 = scalar_select %p147, %s148, %s149
    %p153 = pneg %p147
    %p154 = scmp.eq.s32.totalorder %s12, 1
    %p155 = por %p153, %p154
    %p156 = scmp.ne.s32.totalorder %s148, %s151
    %p157 = scmp.eq.s32.totalorder %s12, 0
    %p158 = por %p156, %p157
    %p159 = scmp.ne.s32.totalorder %s148, %s151
    %p160 = scmp.eq.s32.totalorder %s17, 1
    %p161 = por %p159, %p160
    %p162 = scmp.ne.s32.totalorder %s151, %s152
    %p163 = scmp.eq.s32.totalorder %s17, 0
    %p164 = por %p162, %p163
    %p165 = scmp.ne.s32.totalorder %s151, %s152
    %p166 = scmp.eq.s32.totalorder %s18, 1
    %p167 = por %p165, %p166
    %p169 = scmp.ne.s32.totalorder %s152, %s168
    %p170 = scmp.eq.s32.totalorder %s18, 0
    %p171 = por %p169, %p170
    %s172 = ssub.s32 %s19, %s38
    %s173 = ssub.s32 %s21, %s30
    %s174 = sor.u32 %s172, %s173
    %s175 = ssub.s32 %s20, %s34
    %s176 = sor.u32 %s174, %s175
    %p177 = scmp.eq.s32.totalorder %s176, 0
    %s179 = sadd.s32 %s178, 1
    %s180 = scalar_select %p177, %s178, %s179
    %p183 = pneg %p177
    %p184 = scmp.eq.s32.totalorder %s12, 1
    %p185 = por %p183, %p184
    %p186 = scmp.ne.s32.totalorder %s178, %s181
    %p187 = scmp.eq.s32.totalorder %s12, 0
    %p188 = por %p186, %p187
    %p189 = scmp.ne.s32.totalorder %s178, %s181
    %p190 = scmp.eq.s32.totalorder %s17, 1
    %p191 = por %p189, %p190
    %p192 = scmp.ne.s32.totalorder %s181, %s182
    %p193 = scmp.eq.s32.totalorder %s17, 0
    %p194 = por %p192, %p193
    %p195 = scmp.ne.s32.totalorder %s181, %s182
    %p196 = scmp.eq.s32.totalorder %s18, 1
    %p197 = por %p195, %p196
    %p199 = scmp.ne.s32.totalorder %s182, %s198
    %p200 = scmp.eq.s32.totalorder %s18, 0
    %p201 = por %p199, %p200
    %p202 = scmp.le.s32.totalorder 1, %s12
    %p203 = scmp.lt.s32.totalorder %s12, 3
    %p204 = pnand %p202, %p203
    %p205 = pneg %p204
    // Predicated region
    $region9: #{styled_conv_forward.1} parent=5 // pred_check
      _
    $region10: #{styled_conv_forward.1} parent=5 // pred_check_branch
      %207 = sbr.rel (%p204) target = $region12
    $region11: #{styled_conv_forward.1} parent=5 // pred_region
      %s208 = ssub.s32 %s12, 1
      // Predicated region
      $region13: #{styled_conv_forward.1} parent=11 // pred_check
        %p209 = pneg %p52
      $region14: #{styled_conv_forward.1} parent=11 // pred_check_branch
        %211 = sbr.rel (%p209) target = $region16
      $region15: #{styled_conv_forward.1} parent=11 // pred_region
        _
      $region16: #{styled_conv_forward.1} parent=11 // pred_fallthru
        _
      // Predicated region
      $region17: #{styled_conv_forward.1} parent=11 // pred_check
        %p212 = pneg %p164
      $region18: #{styled_conv_forward.1} parent=11 // pred_check_branch
        %214 = sbr.rel (%p212) target = $region20
      $region19: #{styled_conv_forward.1} parent=11 // pred_region
        %p215 = scmp.lt.s32.totalorder %s24, 0
        %s216 = scalar_select %p215, %s24, 0
        %s217 = smul.addr %s216, 8
        %s218 = scalar_lea.vmem %s4, %s217
      $region20: #{styled_conv_forward.1} parent=11 // pred_fallthru
        _
    $region12: #{styled_conv_forward.1} parent=5 // pred_fallthru
      _
    %p219 = scmp.lt.s32.totalorder %s12, 2
    // Predicated region
    $region21: #{styled_conv_forward.1} parent=5 // pred_check
      %p220 = pneg %p219
    $region22: #{styled_conv_forward.1} parent=5 // pred_check_branch
      %222 = sbr.rel (%p220) target = $region24
    $region23: #{styled_conv_forward.1} parent=5 // pred_region
      // Predicated region
      $region25: #{styled_conv_forward.1} parent=23 // pred_check
        %p223 = pneg %p76
      $region26: #{styled_conv_forward.1} parent=23 // pred_check_branch
        %225 = sbr.rel (%p223) target = $region28
      $region27: #{styled_conv_forward.1} parent=23 // pred_region
        %s226 = smul.u32 2, %s20
        %p227 = scmp.lt.s32.totalorder %s19, 1
        %s228 = scalar_select %p227, %s19, 1
        %p229 = scmp.lt.s32.totalorder %s21, 0
        %s230 = scalar_select %p229, %s21, 0
        %p231 = scmp.lt.s32.totalorder %s226, 1
        %s232 = scalar_select %p231, %s226, 1
        %s233 = smul.addr %s230, 2
        %s234 = sadd.s32 %s232, %s233
        %s235 = smul.addr %s228, 2
        %s236 = sadd.s32 %s234, %s235
        %s237 = smul.addr %s236, 8
        %s238 = scalar_lea.vmem %s1, %s237
        %s239 = smul.u32 2, %s20
      $region28: #{styled_conv_forward.1} parent=23 // pred_fallthru
        _
      // Predicated region
      $region29: #{styled_conv_forward.1} parent=23 // pred_check
        %p240 = pneg %p104
      $region30: #{styled_conv_forward.1} parent=23 // pred_check_branch
        %242 = sbr.rel (%p240) target = $region32
      $region31: #{styled_conv_forward.1} parent=23 // pred_region
        %s243 = smul.u32 2, %s20
        %p244 = scmp.lt.s32.totalorder %s19, 1
        %s245 = scalar_select %p244, %s19, 1
        %p246 = scmp.lt.s32.totalorder %s243, 1
        %s247 = scalar_select %p246, %s243, 1
        %s248 = smul.addr %s245, 2
        %s249 = sadd.s32 %s247, %s248
        %s250 = scalar_lea.vmem %s2, %s249
        %s251 = smul.u32 2, %s20
      $region32: #{styled_conv_forward.1} parent=23 // pred_fallthru
        _
      // Predicated region
      $region33: #{styled_conv_forward.1} parent=23 // pred_check
        %p252 = pneg %p132
      $region34: #{styled_conv_forward.1} parent=23 // pred_check_branch
        %254 = sbr.rel (%p252) target = $region36
      $region35: #{styled_conv_forward.1} parent=23 // pred_region
        %p255 = scmp.lt.s32.totalorder %s19, 1
        %s256 = scalar_select %p255, %s19, 1
        %p257 = scmp.lt.s32.totalorder %s21, 0
        %s258 = scalar_select %p257, %s21, 0
        %s259 = sadd.s32 %s258, %s256
        %s260 = smul.addr %s259, 8
        %s261 = scalar_lea.vmem %s3, %s260
      $region36: #{styled_conv_forward.1} parent=23 // pred_fallthru
        _
    $region24: #{styled_conv_forward.1} parent=5 // pred_fallthru
      _
    %p262 = scmp.le.s32.totalorder 1, %s12
    %p263 = scmp.lt.s32.totalorder %s12, 3
    %p264 = pnand %p262, %p263
    %p265 = pneg %p264
    // Predicated region
    $region37: #{styled_conv_forward.1} parent=5 // pred_check
      _
    $region38: #{styled_conv_forward.1} parent=5 // pred_check_branch
      %267 = sbr.rel (%p264) target = $region40
    $region39: #{styled_conv_forward.1} parent=5 // pred_region
      %s268 = ssub.s32 %s12, 1
      %p269 = pneg %p52
      %p270 = pneg %p49
      %s271 = smul.u32 2, %s23
      %p272 = scmp.lt.s32.totalorder %s22, 1
      %s273 = scalar_select %p272, %s22, 1
      %p274 = scmp.lt.s32.totalorder %s24, 0
      %s275 = scalar_select %p274, %s24, 0
      %p276 = scmp.lt.s32.totalorder %s271, 1
      %s277 = scalar_select %p276, %s271, 1
      %s278 = smul.addr %s275, 2
      %s279 = sadd.s32 %s277, %s278
      %s280 = smul.addr %s273, 2
      %s281 = sadd.s32 %s279, %s280
      %s282 = smul.addr %s281, 8
      %s283 = scalar_lea.vmem %s1, %s282
      %p284 = pneg %p82
      %p285 = pneg %p79
      %s286 = smul.u32 2, %s23
      %p287 = scmp.lt.s32.totalorder %s22, 1
      %s288 = scalar_select %p287, %s22, 1
      %p289 = scmp.lt.s32.totalorder %s286, 1
      %s290 = scalar_select %p289, %s286, 1
      %s291 = smul.addr %s288, 2
      %s292 = sadd.s32 %s290, %s291
      %s293 = scalar_lea.vmem %s2, %s292
      %p294 = pneg %p110
      %p295 = pneg %p107
      %p296 = scmp.lt.s32.totalorder %s22, 1
      %s297 = scalar_select %p296, %s22, 1
      %p298 = scmp.lt.s32.totalorder %s24, 0
      %s299 = scalar_select %p298, %s24, 0
      %s300 = sadd.s32 %s299, %s297
      %s301 = smul.addr %s300, 8
      %s302 = scalar_lea.vmem %s3, %s301
      %p303 = pneg %p138
      %p304 = pneg %p135
      %p305 = scmp.lt.s32.totalorder %s24, 0
      %s306 = scalar_select %p305, %s24, 0
      %s307 = smul.addr %s306, 8
      %s308 = scalar_lea.vmem %s4, %s307
      %p309 = pneg %p164
      %p310 = pneg %p161
      %p311 = pneg %p194
      %p312 = pneg %p191
      %s313 = smul.u32 2, %s23
      %p314 = scmp.lt.s32.totalorder %s22, 1
      %s315 = scalar_select %p314, %s22, 1
      %p316 = scmp.lt.s32.totalorder %s24, 0
      %s317 = scalar_select %p316, %s24, 0
      %p318 = scmp.lt.s32.totalorder %s313, 1
      %s319 = scalar_select %p318, %s313, 1
      %s320 = smul.addr %s317, 2
      %s321 = sadd.s32 %s319, %s320
      %s322 = smul.addr %s315, 2
      %s323 = sadd.s32 %s321, %s322
      %s324 = smul.addr %s323, 8
      %s325 = scalar_lea.vmem %s5, %s324
      %s326 = smul.u32 2, %s23
      %p327 = scmp.lt.s32.totalorder %s22, 1
      %s328 = scalar_select %p327, %s22, 1
      %p329 = scmp.lt.s32.totalorder %s24, 0
      %s330 = scalar_select %p329, %s24, 0
      %p331 = scmp.lt.s32.totalorder %s326, 1
      %s332 = scalar_select %p331, %s326, 1
      %s333 = smul.addr %s330, 2
      %s334 = sadd.s32 %s332, %s333
      %s335 = smul.addr %s328, 2
      %s336 = sadd.s32 %s334, %s335
      %s337 = smul.addr %s336, 8
      %s338 = scalar_lea.vmem %s1, %s337
      %s339 = smul.u32 2, %s23
      %s340 = smul.u32 2, %s23
      %p341 = scmp.lt.s32.totalorder %s22, 1
      %s342 = scalar_select %p341, %s22, 1
      %p343 = scmp.lt.s32.totalorder %s340, 1
      %s344 = scalar_select %p343, %s340, 1
      %s345 = smul.addr %s342, 2
      %s346 = sadd.s32 %s344, %s345
      %s347 = scalar_lea.vmem %s2, %s346
      %s348 = smul.u32 2, %s23
      %p349 = scmp.lt.s32.totalorder %s22, 1
      %s350 = scalar_select %p349, %s22, 1
      %p351 = scmp.lt.s32.totalorder %s24, 0
      %s352 = scalar_select %p351, %s24, 0
      %s353 = sadd.s32 %s352, %s350
      %s354 = smul.addr %s353, 8
      %s355 = scalar_lea.vmem %s3, %s354
      %p356 = scmp.lt.s32.totalorder %s24, 0
      %s357 = scalar_select %p356, %s24, 0
      %s358 = smul.addr %s357, 8
      %s359 = scalar_lea.vmem %s4, %s358
      %s360 = smul.u32 2, %s23
      %p361 = scmp.lt.s32.totalorder %s22, 1
      %s362 = scalar_select %p361, %s22, 1
      %p363 = scmp.lt.s32.totalorder %s24, 0
      %s364 = scalar_select %p363, %s24, 0
      %p365 = scmp.lt.s32.totalorder %s360, 1
      %s366 = scalar_select %p365, %s360, 1
      %s367 = smul.addr %s364, 2
      %s368 = sadd.s32 %s366, %s367
      %s369 = smul.addr %s362, 2
      %s370 = sadd.s32 %s368, %s369
      %s371 = smul.addr %s370, 8
      %s372 = scalar_lea.vmem %s5, %s371
      %s373 = smul.u32 2, %s23
      %s374 = sld [smem:[#allocation2]]
      %v375 = vld [vmem:[%s338] sm:$0xff]
      %v376 = vld [vmem:[%s338 + $0x8] sm:$0xff]
      %v377 = vld [vmem:[%s355] sm:$0xff]
      %379 = vset.pattern.permute.xlu0 0
      %380 = vperm.xlu0 %379, %v377
      %v381 = vpop.permute.xlu0 %380
      %v383 = vmul.f32 %v375, %v381
      %v384 = vmul.f32 %v376, %v381
      %v385 = vld [vmem:[%s347] sm:$0x3]
      %v386 = vstv %s374
      %v387 = vmul.f32 %v386, %v385
      %v389 = vlaneseq
      %v390 = vshrl.u32 %v389, 7
      %v391 = vsub.s32 0, %v390
      %v392 = vrot.slane %v387, %v391
      %v393 = vlaneseq
      %v394 = vshrl.u32 %v393, 7
      %v395 = vsub.s32 1, %v394
      %v396 = vrot.slane %v387, %v395
      %v399 = vadd.f32 %v383, %v392
      %v400 = vadd.f32 %v384, %v396
      %v401 = vld [vmem:[%s359] sm:$0xff]
      %403 = vset.pattern.permute.xlu0 0
      %404 = vperm.xlu0 %403, %v401
      %v405 = vpop.permute.xlu0 %404
      %v407 = vadd.f32 %v399, %v405
      %v408 = vadd.f32 %v400, %v405
      %vm409 = vcmp.ge.f32.partialorder %v407, 0.0
      %vm410 = vcmp.ge.f32.partialorder %v408, 0.0
      %v411 = vmul.f32 %v407, 0.2
      %v412 = vmul.f32 %v408, 0.2
      %v413 = vsel %vm409, %v407, %v411
      %v414 = vsel %vm410, %v408, %v412
      %v415 = vmul.f32 %v413, 1.4142135
      %v416 = vmul.f32 %v414, 1.4142135
      %417 = vst [vmem:[%s372] sm:$0xff] %v415
      %418 = vst [vmem:[%s372 + $0x8] sm:$0xff] %v416
      %s419 = smul.u32 2, %s23
      %p420 = scmp.lt.s32.totalorder %s22, 1
      %s421 = scalar_select %p420, %s22, 1
      %p422 = scmp.lt.s32.totalorder %s24, 0
      %s423 = scalar_select %p422, %s24, 0
      %p424 = scmp.lt.s32.totalorder %s419, 1
      %s425 = scalar_select %p424, %s419, 1
      %s426 = smul.addr %s423, 2
      %s427 = sadd.s32 %s425, %s426
      %s428 = smul.addr %s421, 2
      %s429 = sadd.s32 %s427, %s428
      %s430 = smul.addr %s429, 8
      %s431 = scalar_lea.vmem %s5, %s430
      // Predicated region
      $region41: #{styled_conv_forward.1} parent=39 // pred_check
        %p432 = pneg %p191
      $region42: #{styled_conv_forward.1} parent=39 // pred_check_branch
        %434 = sbr.rel (%p432) target = $region44
      $region43: #{styled_conv_forward.1} parent=39 // pred_region
        %s435 = smul.u32 2, %s23
      $region44: #{styled_conv_forward.1} parent=39 // pred_fallthru
        _
    $region40: #{styled_conv_forward.1} parent=5 // pred_fallthru
      _
    %p436 = scmp.le.s32.totalorder 2, %s12
    // Predicated region
    $region45: #{styled_conv_forward.1} parent=5 // pred_check
      %p437 = pneg %p436
    $region46: #{styled_conv_forward.1} parent=5 // pred_check_branch
      %439 = sbr.rel (%p437) target = $region48
    $region47: #{styled_conv_forward.1} parent=5 // pred_region
      %s440 = ssub.s32 %s12, 2
      // Predicated region
      $region49: #{styled_conv_forward.1} parent=47 // pred_check
        %p441 = pneg %p197
      $region50: #{styled_conv_forward.1} parent=47 // pred_check_branch
        %443 = sbr.rel (%p441) target = $region52
      $region51: #{styled_conv_forward.1} parent=47 // pred_region
        %s444 = smul.u32 2, %s26
        %p445 = scmp.lt.s32.totalorder %s25, 1
        %s446 = scalar_select %p445, %s25, 1
        %p447 = scmp.lt.s32.totalorder %s27, 0
        %s448 = scalar_select %p447, %s27, 0
        %p449 = scmp.lt.s32.totalorder %s444, 1
        %s450 = scalar_select %p449, %s444, 1
        %s451 = smul.addr %s448, 2
        %s452 = sadd.s32 %s450, %s451
        %s453 = smul.addr %s446, 2
        %s454 = sadd.s32 %s452, %s453
        %s455 = smul.addr %s454, 8
        %s456 = scalar_lea.vmem %s5, %s455
      $region52: #{styled_conv_forward.1} parent=47 // pred_fallthru
        _
    $region48: #{styled_conv_forward.1} parent=5 // pred_fallthru
      _
  $region6: #{styled_conv_forward.1} parent=0 // loop_footer
    %s16 = sadd.s32 1, %s12
  $region7: #{styled_conv_forward.1} parent=0 // loop_footer_branch
    %11 = sbr.rel target = $region3
  $region8: #{styled_conv_forward.1} parent=0 // loop_exit
    _

</llo_original>
